<compile_context>
chip_gen: v7x
topology: tpu7x:2x2x1
jax: 0.10.0
libtpu: 0.0.40
codegen_flags: <defaults>
</compile_context>

<pallas_src>
import functools

import jax
import jax.numpy as jnp
from jax import lax
from jax.experimental import pallas as pl
from jax.experimental.pallas import tpu as pltpu

_NEG_BIG = -1e30  # finite "-inf" for masking / init (avoids inf-inf NaNs)


def _round_up(x, m):
    return ((x + m - 1) // m) * m


def _gpt_head_kernel(state_ref, emb_ref, out_ref, m_ref, l_ref, *, v_real, v_tile):
    # grid = (row_tiles, 2, vocab_tiles); vocab (reduction) axis is last.
    #   pass p == 0 : online max / sum-exp over vocab tiles (stats in scratch)
    #   pass p == 1 : recompute logits tile, write logits - logsumexp
    p = pl.program_id(1)
    j = pl.program_id(2)

    tm, tv = out_ref.shape

    # (TM, E) x (TV, E) -> (TM, TV) on the MXU; contraction over E expressed
    # via dot_general so no transposed copy of the embedding tile is built.
    logits = lax.dot_general(
        state_ref[...], emb_ref[...],
        dimension_numbers=(((1,), (1,)), ((), ())),
        preferred_element_type=jnp.float32)

    # Mask padded vocab columns (static check: only emitted if V was padded).
    if v_real % v_tile != 0:
        col = j * tv + lax.broadcasted_iota(jnp.int32, (tm, tv), 1)
        logits = jnp.where(col < v_real, logits, _NEG_BIG)

    @pl.when(jnp.logical_and(p == 0, j == 0))
    def _init():
        m_ref[...] = jnp.full_like(m_ref, _NEG_BIG)
        l_ref[...] = jnp.zeros_like(l_ref)

    @pl.when(p == 0)
    def _stats():
        m_prev = m_ref[...]
        m_new = jnp.maximum(m_prev, jnp.max(logits, axis=-1, keepdims=True))
        l_ref[...] = (l_ref[...] * jnp.exp(m_prev - m_new)
                      + jnp.sum(jnp.exp(logits - m_new), axis=-1, keepdims=True))
        m_ref[...] = m_new

    @pl.when(p == 1)
    def _write():
        lse = m_ref[...] + jnp.log(l_ref[...])
        out_ref[...] = (logits - lse).astype(out_ref.dtype)


def gpt_head(state, embedding_table, *, row_tile=256, vocab_tile=512,
             out_dtype=jnp.float32):
    """log_softmax(state.reshape(-1, E) @ embedding_table.T) as a Pallas kernel.

    state: (..., E); embedding_table: (V, E).  Returns (N, V) with N = prod(...)
    row_tile: 128 is a good choice on v5e (4x128^2 MXU), 256 on v6e/v7x.
    """
    V, E = embedding_table.shape
    state2d = state.reshape(-1, E)
    N = state2d.shape[0]

    # Tile sizes: multiples of (8, 128); clamp so tiny/toy shapes don't over-pad.
    tm = min(row_tile, _round_up(N, 8))
    tv = min(vocab_tile, _round_up(V, 128))
    n_pad = _round_up(N, tm)
    v_pad = _round_up(V, tv)

    if n_pad != N:
        state2d = jnp.pad(state2d, ((0, n_pad - N), (0, 0)))
    if v_pad != V:
        embedding_table = jnp.pad(embedding_table, ((0, v_pad - V), (0, 0)))

    grid = (n_pad // tm, 2, v_pad // tv)

    itemsize = lambda dt: jnp.dtype(dt).itemsize
    per_step = (tm * E * itemsize(state2d.dtype)
                + tv * E * itemsize(embedding_table.dtype)
                + tm * tv * itemsize(out_dtype))
    # Double-buffered tiles + margin; cap comfortably under v7x's 64 MiB VMEM.
    vmem_limit = int(min(max(4 * per_step + (4 << 20), 16 << 20), 56 << 20))

    kernel = functools.partial(_gpt_head_kernel, v_real=V, v_tile=tv)

    out = pl.pallas_call(
        kernel,
        out_shape=jax.ShapeDtypeStruct((n_pad, v_pad), out_dtype),
        grid_spec=pltpu.PrefetchScalarGridSpec(
            num_scalar_prefetch=0,
            grid=grid,
            in_specs=[
                # state row tile: resident across both passes and all vocab tiles
                pl.BlockSpec((tm, E), lambda i, p, j: (i, 0)),
                # embedding-table tile: streamed along the vocab axis
                # TODO(synk): consider pipeline_mode=pl.Buffered(3) on v6e to
                # hide the slower HBM weight stream.
                pl.BlockSpec((tv, E), lambda i, p, j: (j, 0)),
            ],
            # pass 0 parks on block (i, 0) without writing; pass 1 writes (i, j),
            # so every output tile is written back exactly once, lane-dense.
            out_specs=pl.BlockSpec((tm, tv), lambda i, p, j: (i, j * p)),
            scratch_shapes=[
                pltpu.VMEM((tm, 1), jnp.float32),   # running row max
                pltpu.VMEM((tm, 1), jnp.float32),   # running row sum-exp
            ],
        ),
        compiler_params=pltpu.CompilerParams(
            dimension_semantics=("parallel", "arbitrary", "arbitrary"),
            vmem_limit_bytes=vmem_limit,
        ),
    )(state2d, embedding_table)

    return out[:N, :V]


if __name__ == "__main__":
    key = jax.random.PRNGKey(0)
    k1, k2, k3, k4 = jax.random.split(key, 4)

    # ---- Test 1: toy GPT_Head shapes (B=2, S=8, E=32, V=64), f32 ----
    B, S, E, V = 2, 8, 32, 64
    state = jax.random.normal(k1, (B, S, E), dtype=jnp.float32)
    emb = jax.random.normal(k2, (V, E), dtype=jnp.float32) * 0.02
    out = gpt_head(state, emb)
    jax.block_until_ready(out)
    ref = jax.nn.log_softmax(state.reshape(-1, E) @ emb.T, axis=-1)
    assert out.shape == (B * S, V)
    assert jnp.allclose(out, ref, atol=1e-4, rtol=1e-4), "mismatch vs reference (f32 toy)"

    # ---- Test 2: ragged shapes exercising row/vocab padding + multi-tile vocab ----
    B2, S2, E2, V2 = 3, 5, 48, 300
    state2 = jax.random.normal(k3, (B2, S2, E2), dtype=jnp.float32)
    emb2 = jax.random.normal(k4, (V2, E2), dtype=jnp.float32) * 0.02
    out2 = gpt_head(state2, emb2, row_tile=8, vocab_tile=128)
    jax.block_until_ready(out2)
    ref2 = jax.nn.log_softmax(state2.reshape(-1, E2) @ emb2.T, axis=-1)
    assert out2.shape == (B2 * S2, V2)
    assert jnp.allclose(out2, ref2, atol=1e-4, rtol=1e-4), "mismatch vs reference (padded)"

    # ---- Test 3: bf16 operand streaming (MXU-native), f32 stats/output ----
    out3 = gpt_head(state.astype(jnp.bfloat16), emb.astype(jnp.bfloat16))
    jax.block_until_ready(out3)
    assert jnp.allclose(out3, ref, atol=3e-2, rtol=3e-2), "mismatch vs reference (bf16)"

    print("KERNEL_OK")
</pallas_src>

<mosaic_0001>
module attributes {stable_mosaic.version = 11 : i64} {
  func.func @_gpt_head_kernel(%arg0: i32, %arg1: i32, %arg2: i32, %arg3: memref<16x32xf32, #tpu.memory_space<vmem>>, %arg4: memref<128x32xf32, #tpu.memory_space<vmem>>, %arg5: memref<16x128xf32, #tpu.memory_space<vmem>>, %arg6: memref<16x1xf32, #tpu.memory_space<vmem>>, %arg7: memref<16x1xf32, #tpu.memory_space<vmem>>) attributes {dimension_semantics = [#tpu.dimension_semantics<parallel>, #tpu.dimension_semantics<arbitrary>, #tpu.dimension_semantics<arbitrary>], iteration_bounds = array<i64: 1, 2, 1>, scalar_prefetch = 0 : i64, scratch_operands = 2 : i64, tpu.core_type = #tpu.core_type<tc>, window_params = [{transform_indices = @transform_0, window_bounds = array<i64: 16, 32>}, {transform_indices = @transform_1, window_bounds = array<i64: 128, 32>}, {transform_indices = @transform_2, window_bounds = array<i64: 16, 128>}]} {
    %c0 = arith.constant 0 : index
    %c0_0 = arith.constant 0 : index
    %0 = vector.load %arg3[%c0, %c0_0] : memref<16x32xf32, #tpu.memory_space<vmem>>, vector<16x32xf32>
    %c0_1 = arith.constant 0 : index
    %c0_2 = arith.constant 0 : index
    %1 = vector.load %arg4[%c0_1, %c0_2] : memref<128x32xf32, #tpu.memory_space<vmem>>, vector<128x32xf32>
    %cst = arith.constant dense<0.000000e+00> : vector<16x128xf32>
    %2 = tpu.matmul %0, %1, %cst {dimension_numbers = #tpu.dot_dimension_numbers<[1], [1], [0], [0], [0, 0, 1, 0], [], []>} : vector<16x32xf32>, vector<128x32xf32>, vector<16x128xf32> -> vector<16x128xf32>
    %c128_i32 = arith.constant 128 : i32
    %3 = arith.muli %arg2, %c128_i32 : i32
    %4 = tpu.iota {dimensions = array<i32: 1>} : vector<16x128xi32>
    %5 = vector.broadcast %3 : i32 to vector<16x128xi32>
    %6 = arith.addi %5, %4 : vector<16x128xi32>
    %c64_i32 = arith.constant 64 : i32
    %7 = vector.broadcast %c64_i32 : i32 to vector<16x128xi32>
    %8 = arith.cmpi slt, %6, %7 : vector<16x128xi32>
    %cst_3 = arith.constant -1.000000e+30 : f32
    %9 = vector.broadcast %cst_3 : f32 to vector<16x128xf32>
    %10 = arith.select %8, %2, %9 : vector<16x128xi1>, vector<16x128xf32>
    %c0_i32 = arith.constant 0 : i32
    %11 = arith.cmpi eq, %arg1, %c0_i32 : i32
    %c0_i32_4 = arith.constant 0 : i32
    %12 = arith.cmpi eq, %arg2, %c0_i32_4 : i32
    %13 = arith.andi %11, %12 : i1
    %14 = arith.extui %13 : i1 to i32
    %c0_i32_5 = arith.constant 0 : i32
    %15 = arith.cmpi ne, %14, %c0_i32_5 : i32
    scf.if %15 {
      %cst_9 = arith.constant -1.000000e+30 : f32
      %22 = vector.broadcast %cst_9 : f32 to vector<16x1xf32>
      %c0_10 = arith.constant 0 : index
      %c0_11 = arith.constant 0 : index
      %23 = vector.load %arg6[%c0_10, %c0_11] : memref<16x1xf32, #tpu.memory_space<vmem>>, vector<16x1xf32>
      tpu.vector_store %arg6[%c0_10, %c0_11], %22 {strides = array<i32>} : memref<16x1xf32, #tpu.memory_space<vmem>>, vector<16x1xf32>,
      %cst_12 = arith.constant 0.000000e+00 : f32
      %24 = vector.broadcast %cst_12 : f32 to vector<16x1xf32>
      %c0_13 = arith.constant 0 : index
      %c0_14 = arith.constant 0 : index
      %25 = vector.load %arg7[%c0_13, %c0_14] : memref<16x1xf32, #tpu.memory_space<vmem>>, vector<16x1xf32>
      tpu.vector_store %arg7[%c0_13, %c0_14], %24 {strides = array<i32>} : memref<16x1xf32, #tpu.memory_space<vmem>>, vector<16x1xf32>,
    } else {
    }
    %c0_i32_6 = arith.constant 0 : i32
    %16 = arith.cmpi eq, %arg1, %c0_i32_6 : i32
    %17 = arith.extui %16 : i1 to i32
    %c0_i32_7 = arith.constant 0 : i32
    %18 = arith.cmpi ne, %17, %c0_i32_7 : i32
    scf.if %18 {
      %c0_9 = arith.constant 0 : index
      %c0_10 = arith.constant 0 : index
      %22 = vector.load %arg6[%c0_9, %c0_10] : memref<16x1xf32, #tpu.memory_space<vmem>>, vector<16x1xf32>
      %cst_11 = arith.constant dense<0xFF800000> : vector<16xf32>
      %23 = vector.multi_reduction <maximumf>, %10, %cst_11 [1] : vector<16x128xf32> to vector<16xf32>
      %24 = vector.shape_cast %23 : vector<16xf32> to vector<16x1xf32>
      %25 = arith.maximumf %22, %24 : vector<16x1xf32>
      %c0_12 = arith.constant 0 : index
      %c0_13 = arith.constant 0 : index
      %26 = vector.load %arg7[%c0_12, %c0_13] : memref<16x1xf32, #tpu.memory_space<vmem>>, vector<16x1xf32>
      %27 = arith.subf %22, %25 : vector<16x1xf32>
      %28 = math.exp %27 : vector<16x1xf32>
      %29 = arith.mulf %26, %28 : vector<16x1xf32>
      %30 = vector.broadcast %25 : vector<16x1xf32> to vector<16x128xf32>
      %31 = arith.subf %10, %30 : vector<16x128xf32>
      %32 = math.exp %31 : vector<16x128xf32>
      %cst_14 = arith.constant dense<0.000000e+00> : vector<16xf32>
      %33 = vector.multi_reduction <add>, %32, %cst_14 [1] : vector<16x128xf32> to vector<16xf32>
      %34 = vector.shape_cast %33 : vector<16xf32> to vector<16x1xf32>
      %35 = arith.addf %29, %34 : vector<16x1xf32>
      %c0_15 = arith.constant 0 : index
      %c0_16 = arith.constant 0 : index
      %36 = vector.load %arg7[%c0_15, %c0_16] : memref<16x1xf32, #tpu.memory_space<vmem>>, vector<16x1xf32>
      tpu.vector_store %arg7[%c0_15, %c0_16], %35 {strides = array<i32>} : memref<16x1xf32, #tpu.memory_space<vmem>>, vector<16x1xf32>,
      %c0_17 = arith.constant 0 : index
      %c0_18 = arith.constant 0 : index
      %37 = vector.load %arg6[%c0_17, %c0_18] : memref<16x1xf32, #tpu.memory_space<vmem>>, vector<16x1xf32>
      tpu.vector_store %arg6[%c0_17, %c0_18], %25 {strides = array<i32>} : memref<16x1xf32, #tpu.memory_space<vmem>>, vector<16x1xf32>,
    } else {
    }
    %c1_i32 = arith.constant 1 : i32
    %19 = arith.cmpi eq, %arg1, %c1_i32 : i32
    %20 = arith.extui %19 : i1 to i32
    %c0_i32_8 = arith.constant 0 : i32
    %21 = arith.cmpi ne, %20, %c0_i32_8 : i32
    scf.if %21 {
      %c0_9 = arith.constant 0 : index
      %c0_10 = arith.constant 0 : index
      %22 = vector.load %arg6[%c0_9, %c0_10] : memref<16x1xf32, #tpu.memory_space<vmem>>, vector<16x1xf32>
      %c0_11 = arith.constant 0 : index
      %c0_12 = arith.constant 0 : index
      %23 = vector.load %arg7[%c0_11, %c0_12] : memref<16x1xf32, #tpu.memory_space<vmem>>, vector<16x1xf32>
      %24 = math.log %23 : vector<16x1xf32>
      %25 = arith.addf %22, %24 : vector<16x1xf32>
      %26 = vector.broadcast %25 : vector<16x1xf32> to vector<16x128xf32>
      %27 = arith.subf %10, %26 : vector<16x128xf32>
      %c0_13 = arith.constant 0 : index
      %c0_14 = arith.constant 0 : index
      %28 = vector.load %arg5[%c0_13, %c0_14] : memref<16x128xf32, #tpu.memory_space<vmem>>, vector<16x128xf32>
      tpu.vector_store %arg5[%c0_13, %c0_14], %27 {strides = array<i32>} : memref<16x128xf32, #tpu.memory_space<vmem>>, vector<16x128xf32>,
    } else {
    }
    return
  }
  func.func @transform_0(%arg0: i32, %arg1: i32, %arg2: i32) -> (i32, i32) {
    %c0_i32 = arith.constant 0 : i32
    %c0_i32_0 = arith.constant 0 : i32
    return %arg0, %c0_i32 : i32, i32
  }
  func.func @transform_1(%arg0: i32, %arg1: i32, %arg2: i32) -> (i32, i32) {
    %c0_i32 = arith.constant 0 : i32
    %c0_i32_0 = arith.constant 0 : i32
    return %arg2, %c0_i32 : i32, i32
  }
  func.func @transform_2(%arg0: i32, %arg1: i32, %arg2: i32) -> (i32, i32) {
    %0 = arith.muli %arg2, %arg1 : i32
    %c0_i32 = arith.constant 0 : i32
    return %arg0, %0 : i32, i32
  }
}

</mosaic_0001>

<llo_original>
// kernel: tpu_custom_call.1
$region0: #{tpu_custom_call.1}
  #allocation0 [shape = 'u32[]', space=smem, size = 0x4, offset = 0x4, fixed_abs, tag = 'smem constant byte address 0x4 - core index']
  #allocation1 [shape = 'u32[144,128]{1,0:T(1,128)}', space=vmem, size = 0x12000, scoped, tag = 'internal scratch']
  #allocation2 [shape = 'f32[16,1]{1,0:T(8,128)}', space=vmem, size = 0x2000, scoped, tag = 'scratch operand']
  #allocation3 [shape = 'f32[16,1]{1,0:T(8,128)}', space=vmem, size = 0x2000, scoped, tag = 'scratch operand']
  %s0 = inlined_call_operand.vmem [shape: f32[16,32], index: 0, kind: input, shape index: {}]
  %s1 = inlined_call_operand.vmem [shape: f32[128,32], index: 1, kind: input, shape index: {}]
  %s2 = inlined_call_operand.hbm [shape: f32[16,128], index: 2, kind: output, shape index: {}]
  %s3 = sld [smem:[#allocation0]]
  $region53: #{tpu_custom_call.1} parent=0
    _
  %s5 = ssub.s32 1, %s3
  %s6 = scalar_select 0, %s5, %s3
  $region1: #{tpu_custom_call.1} parent=0
    #allocation4 [shape = 'u8[16384]{0}', space=vmem, size = 0x4000, scoped, tag = 'output window, operand 0']
    #allocation5 [shape = 's32[2]{0}', space=sflag, size = 0x8, scoped, tag = 'scoped memory for tpu_custom_call.1']
    %7 = vsyncpa [#allocation5], 0
    %s8 = scalar_lea.sflag [#allocation5], 1
    %9 = vsyncpa %s8, 0
    loop: start=0, step=1, limit=4
    $region2: #{tpu_custom_call.1} parent=1 // loop_pre_header
      _
    $region3: #{tpu_custom_call.1} parent=1 // loop_header
      %s11 = sphi 0, %s15
      %p12 = scmp.ge.s32.totalorder %s11, 4
      %s18 = sphi 0, %s37
      %s19 = sphi 0, %s33
      %s20 = sphi 0, %s29
      %s21 = sphi 0, %s18
      %s22 = sphi 0, %s19
      %s23 = sphi 0, %s20
      %s24 = sphi 0, %s21
      %s25 = sphi 0, %s22
      %s26 = sphi 0, %s23
      %s40 = sphi 0, %s42
      %s43 = sphi 0, %s40
      %s44 = sphi 0, %s43
      %s60 = sphi 0, %s44
      %s66 = sphi 0, %s68
      %s69 = sphi 0, %s66
      %s70 = sphi 0, %s69
      %s86 = sphi 0, %s70
      %s96 = sphi 0, %s98
      %s99 = sphi 0, %s96
      %s100 = sphi 0, %s99
      %s116 = sphi 0, %s100
    $region4: #{tpu_custom_call.1} parent=1 // loop_header_branch
      %14 = sbr.rel (%p12) target = $region8
    $region5: #{tpu_custom_call.1} parent=1 // loop_body
      %s16 = ssub.s32 %s11, 1
      %s17 = ssub.s32 %s11, 2
      %s27 = sadd.s32 1, %s20
      %p28 = scmp.ge.s32.totalorder %s27, 1
      %s29 = scalar_select %p28, 0, %s27
      %s30 = sadd.s32 1, %s19
      %s31 = scalar_select %p28, %s30, %s19
      %p32 = scmp.ge.s32.totalorder %s31, 2
      %s33 = scalar_select %p32, 0, %s31
      %s34 = sadd.s32 1, %s18
      %s35 = scalar_select %p32, %s34, %s18
      %p36 = scmp.ge.s32.totalorder %s35, 1
      %s37 = scalar_select %p36, 0, %s35
      %s38 = ssub.s32 %s18, %s37
      %p39 = scmp.eq.s32.totalorder %s38, 0
      %s41 = sadd.s32 %s40, 1
      %s42 = scalar_select %p39, %s40, %s41
      %p45 = pneg %p39
      %p46 = scmp.eq.s32.totalorder %s11, 1
      %p47 = por %p45, %p46
      %p48 = scmp.ne.s32.totalorder %s40, %s43
      %p49 = scmp.eq.s32.totalorder %s11, 0
      %p50 = por %p48, %p49
      %p51 = scmp.ne.s32.totalorder %s40, %s43
      %p52 = scmp.eq.s32.totalorder %s16, 1
      %p53 = por %p51, %p52
      %p54 = scmp.ne.s32.totalorder %s43, %s44
      %p55 = scmp.eq.s32.totalorder %s16, 0
      %p56 = por %p54, %p55
      %p57 = scmp.ne.s32.totalorder %s43, %s44
      %p58 = scmp.eq.s32.totalorder %s17, 1
      %p59 = por %p57, %p58
      %p61 = scmp.ne.s32.totalorder %s44, %s60
      %p62 = scmp.eq.s32.totalorder %s17, 0
      %p63 = por %p61, %p62
      %s64 = ssub.s32 %s20, %s29
      %p65 = scmp.eq.s32.totalorder %s64, 0
      %s67 = sadd.s32 %s66, 1
      %s68 = scalar_select %p65, %s66, %s67
      %p71 = pneg %p65
      %p72 = scmp.eq.s32.totalorder %s11, 1
      %p73 = por %p71, %p72
      %p74 = scmp.ne.s32.totalorder %s66, %s69
      %p75 = scmp.eq.s32.totalorder %s11, 0
      %p76 = por %p74, %p75
      %p77 = scmp.ne.s32.totalorder %s66, %s69
      %p78 = scmp.eq.s32.totalorder %s16, 1
      %p79 = por %p77, %p78
      %p80 = scmp.ne.s32.totalorder %s69, %s70
      %p81 = scmp.eq.s32.totalorder %s16, 0
      %p82 = por %p80, %p81
      %p83 = scmp.ne.s32.totalorder %s69, %s70
      %p84 = scmp.eq.s32.totalorder %s17, 1
      %p85 = por %p83, %p84
      %p87 = scmp.ne.s32.totalorder %s70, %s86
      %p88 = scmp.eq.s32.totalorder %s17, 0
      %p89 = por %p87, %p88
      %s90 = smul.u32 %s20, %s19
      %s91 = smul.u32 %s29, %s33
      %s92 = ssub.s32 %s18, %s37
      %s93 = ssub.s32 %s90, %s91
      %s94 = sor.u32 %s92, %s93
      %p95 = scmp.eq.s32.totalorder %s94, 0
      %s97 = sadd.s32 %s96, 1
      %s98 = scalar_select %p95, %s96, %s97
      %p101 = pneg %p95
      %p102 = scmp.eq.s32.totalorder %s11, 1
      %p103 = por %p101, %p102
      %p104 = scmp.ne.s32.totalorder %s96, %s99
      %p105 = scmp.eq.s32.totalorder %s11, 0
      %p106 = por %p104, %p105
      %p107 = scmp.ne.s32.totalorder %s96, %s99
      %p108 = scmp.eq.s32.totalorder %s16, 1
      %p109 = por %p107, %p108
      %p110 = scmp.ne.s32.totalorder %s99, %s100
      %p111 = scmp.eq.s32.totalorder %s16, 0
      %p112 = por %p110, %p111
      %p113 = scmp.ne.s32.totalorder %s99, %s100
      %p114 = scmp.eq.s32.totalorder %s17, 1
      %p115 = por %p113, %p114
      %p117 = scmp.ne.s32.totalorder %s100, %s116
      %p118 = scmp.eq.s32.totalorder %s17, 0
      %p119 = por %p117, %p118
      %p120 = scmp.le.s32.totalorder 1, %s11
      %p121 = scmp.lt.s32.totalorder %s11, 3
      %p122 = pnand %p120, %p121
      %p123 = pneg %p122
      // Predicated region
      $region9: #{tpu_custom_call.1} parent=5 // pred_check
        _
      $region10: #{tpu_custom_call.1} parent=5 // pred_check_branch
        %125 = sbr.rel (%p122) target = $region12
      $region11: #{tpu_custom_call.1} parent=5 // pred_region
        %s126 = ssub.s32 %s11, 1
        // Predicated region
        $region13: #{tpu_custom_call.1} parent=11 // pred_check
          %p127 = pneg %p56
        $region14: #{tpu_custom_call.1} parent=11 // pred_check_branch
          %129 = sbr.rel (%p127) target = $region16
        $region15: #{tpu_custom_call.1} parent=11 // pred_region
          %s130 = smul.u32 2, %s21
          %p131 = scmp.lt.s32.totalorder %s130, 1
          %s132 = scalar_select %p131, %s130, 1
          %s133 = smul.addr %s132, 8
          %s134 = scalar_lea.vmem %s0, %s133
          %s135 = smul.u32 2, %s21
        $region16: #{tpu_custom_call.1} parent=11 // pred_fallthru
          _
        // Predicated region
        $region17: #{tpu_custom_call.1} parent=11 // pred_check
          %p136 = pneg %p82
        $region18: #{tpu_custom_call.1} parent=11 // pred_check_branch
          %138 = sbr.rel (%p136) target = $region20
        $region19: #{tpu_custom_call.1} parent=11 // pred_region
          %s139 = smul.u32 16, %s23
          %p140 = scmp.lt.s32.totalorder %s139, 15
          %s141 = scalar_select %p140, %s139, 15
          %s142 = smul.addr %s141, 8
          %s143 = scalar_lea.vmem %s1, %s142
          %s144 = smul.u32 16, %s23
        $region20: #{tpu_custom_call.1} parent=11 // pred_fallthru
          _
      $region12: #{tpu_custom_call.1} parent=5 // pred_fallthru
        _
      %p145 = scmp.lt.s32.totalorder %s11, 2
      // Predicated region
      $region21: #{tpu_custom_call.1} parent=5 // pred_check
        %p146 = pneg %p145
      $region22: #{tpu_custom_call.1} parent=5 // pred_check_branch
        %148 = sbr.rel (%p146) target = $region24
      $region23: #{tpu_custom_call.1} parent=5 // pred_region
        _
      $region24: #{tpu_custom_call.1} parent=5 // pred_fallthru
        _
      %p149 = scmp.le.s32.totalorder 1, %s11
      %p150 = scmp.lt.s32.totalorder %s11, 3
      %p151 = pnand %p149, %p150
      %p152 = pneg %p151
      // Predicated region
      $region25: #{tpu_custom_call.1} parent=5 // pred_check
        _
      $region26: #{tpu_custom_call.1} parent=5 // pred_check_branch
        %154 = sbr.rel (%p151) target = $region28
      $region27: #{tpu_custom_call.1} parent=5 // pred_region
        %s155 = ssub.s32 %s11, 1
        %s156 = smul.u32 2, %s21
        %p157 = scmp.lt.s32.totalorder %s156, 1
        %s158 = scalar_select %p157, %s156, 1
        %s159 = smul.addr %s158, 8
        %s160 = scalar_lea.vmem %s0, %s159
        %p161 = pneg %p56
        %p162 = pneg %p53
        %s163 = smul.u32 16, %s23
        %p164 = scmp.lt.s32.totalorder %s163, 15
        %s165 = scalar_select %p164, %s163, 15
        %s166 = smul.addr %s165, 8
        %s167 = scalar_lea.vmem %s1, %s166
        %p168 = pneg %p82
        %p169 = pneg %p79
        %p170 = pneg %p112
        %p171 = pneg %p109
        %s172 = sand.u32 %s99, 1
        %s173 = scalar_lea.sflag [#allocation5], %s172
        %s174 = sand.u32 %s99, 1
        %s175 = smul.addr %s174, 16
        %s176 = scalar_lea.vmem [#allocation4], %s175
        %s177 = smul.u32 2, %s21
        %p178 = scmp.lt.s32.totalorder %s177, 1
        %s179 = scalar_select %p178, %s177, 1
        %s180 = smul.addr %s179, 8
        %s181 = scalar_lea.vmem %s0, %s180
        %s182 = smul.u32 2, %s21
        %s183 = smul.u32 16, %s23
        %p184 = scmp.lt.s32.totalorder %s183, 15
        %s185 = scalar_select %p184, %s183, 15
        %s186 = smul.addr %s185, 8
        %s187 = scalar_lea.vmem %s1, %s186
        %s188 = smul.u32 16, %s23
        %s189 = smul.u32 %s23, %s22
        %s190 = smul.u32 2, %s21
        %v191 = vld [vmem:[%s181] sm:$0xff]
        %v192 = vld [vmem:[%s181 + $0x8] sm:$0xff]
        %v193 = vld [vmem:[%s187] sm:$0xff]
        %v194 = vld [vmem:[%s187 + $0x8] sm:$0xff]
        %v195 = vld [vmem:[%s187 + $0x10] sm:$0xff]
        %v196 = vld [vmem:[%s187 + $0x18] sm:$0xff]
        %v197 = vld [vmem:[%s187 + $0x20] sm:$0xff]
        %v198 = vld [vmem:[%s187 + $0x28] sm:$0xff]
        %v199 = vld [vmem:[%s187 + $0x30] sm:$0xff]
        %v200 = vld [vmem:[%s187 + $0x38] sm:$0xff]
        %v201 = vld [vmem:[%s187 + $0x40] sm:$0xff]
        %v202 = vld [vmem:[%s187 + $0x48] sm:$0xff]
        %v203 = vld [vmem:[%s187 + $0x50] sm:$0xff]
        %v204 = vld [vmem:[%s187 + $0x58] sm:$0xff]
        %v205 = vld [vmem:[%s187 + $0x60] sm:$0xff]
        %v206 = vld [vmem:[%s187 + $0x68] sm:$0xff]
        %v207 = vld [vmem:[%s187 + $0x70] sm:$0xff]
        %v208 = vld [vmem:[%s187 + $0x78] sm:$0xff]
        %vm209 = vcmask 261120
        %v211 = vsel %vm209, %v191, 0
        %v214 = vsel %vm209, %v192, 0
        %v217 = vsel %vm209, %v193, 0
        %v220 = vsel %vm209, %v194, 0
        %v223 = vsel %vm209, %v195, 0
        %v226 = vsel %vm209, %v196, 0
        %v229 = vsel %vm209, %v197, 0
        %v232 = vsel %vm209, %v198, 0
        %v235 = vsel %vm209, %v199, 0
        %v238 = vsel %vm209, %v200, 0
        %v241 = vsel %vm209, %v201, 0
        %v244 = vsel %vm209, %v202, 0
        %v247 = vsel %vm209, %v203, 0
        %v250 = vsel %vm209, %v204, 0
        %v253 = vsel %vm209, %v205, 0
        %v256 = vsel %vm209, %v206, 0
        %v259 = vsel %vm209, %v207, 0
        %v262 = vsel %vm209, %v208, 0
        %264 = vmatprep.subr.mxu0 0.0
        %265 = vmatpush1.xpose.msra.mxu0 %v217
        %266 = vmatprep.subr.mxu0 0.0
        %267 = vmatpush1.xpose.msra.mxu0 %v220
        %268 = vmatprep.subr.mxu0 0.0
        %269 = vmatpush1.xpose.msra.mxu0 %v223
        %270 = vmatprep.subr.mxu0 0.0
        %271 = vmatpush1.xpose.msra.mxu0 %v226
        %272 = vmatprep.subr.mxu0 0.0
        %273 = vmatpush1.xpose.msra.mxu0 %v229
        %274 = vmatprep.subr.mxu0 0.0
        %275 = vmatpush1.xpose.msra.mxu0 %v232
        %276 = vmatprep.subr.mxu0 0.0
        %277 = vmatpush1.xpose.msra.mxu0 %v235
        %278 = vmatprep.subr.mxu0 0.0
        %279 = vmatpush1.xpose.msra.mxu0 %v238
        %280 = vmatprep.subr.mxu0 0.0
        %281 = vmatpush1.xpose.msra.mxu0 %v241
        %282 = vmatprep.subr.mxu0 0.0
        %283 = vmatpush1.xpose.msra.mxu0 %v244
        %284 = vmatprep.subr.mxu0 0.0
        %285 = vmatpush1.xpose.msra.mxu0 %v247
        %286 = vmatprep.subr.mxu0 0.0
        %287 = vmatpush1.xpose.msra.mxu0 %v250
        %288 = vmatprep.subr.mxu0 0.0
        %289 = vmatpush1.xpose.msra.mxu0 %v253
        %290 = vmatprep.subr.mxu0 0.0
        %291 = vmatpush1.xpose.msra.mxu0 %v256
        %292 = vmatprep.subr.mxu0 0.0
        %293 = vmatpush1.xpose.msra.mxu0 %v259
        %294 = vmatprep.subr.mxu0 0.0
        %295 = vmatpush1.xpose.msra.mxu0 %v262
        %296 = vmatprep.subr.mxu0 0.0
        %297 = vmatpush1.xpose.msra.mxu0 0.0
        %298 = vmatprep.subr.mxu0 0.0
        %299 = vmatpush1.xpose.msra.mxu0 0.0
        %300 = vmatprep.subr.mxu0 0.0
        %301 = vmatpush1.xpose.msra.mxu0 0.0
        %302 = vmatprep.subr.mxu0 0.0
        %303 = vmatpush1.xpose.msra.mxu0 0.0
        %304 = vmatprep.subr.mxu0 0.0
        %305 = vmatpush1.xpose.msra.mxu0 0.0
        %306 = vmatprep.subr.mxu0 0.0
        %307 = vmatpush1.xpose.msra.mxu0 0.0
        %308 = vmatprep.subr.mxu0 0.0
        %309 = vmatpush1.xpose.msra.mxu0 0.0
        %310 = vmatprep.subr.mxu0 0.0
        %311 = vmatpush1.xpose.msra.mxu0 0.0
        %312 = vmatprep.subr.mxu0 0.0
        %313 = vmatpush1.xpose.msra.mxu0 0.0
        %314 = vmatprep.subr.mxu0 0.0
        %315 = vmatpush1.xpose.msra.mxu0 0.0
        %316 = vmatprep.subr.mxu0 0.0
        %317 = vmatpush1.xpose.msra.mxu0 0.0
        %318 = vmatprep.subr.mxu0 0.0
        %319 = vmatpush1.xpose.msra.mxu0 0.0
        %320 = vmatprep.subr.mxu0 0.0
        %321 = vmatpush1.xpose.msra.mxu0 0.0
        %322 = vmatprep.subr.mxu0 0.0
        %323 = vmatpush1.xpose.msra.mxu0 0.0
        %324 = vmatprep.subr.mxu0 0.0
        %325 = vmatpush1.xpose.msra.mxu0 0.0
        %326 = vmatprep.subr.mxu0 0.0
        %327 = vmatpush1.xpose.msra.mxu0 0.0
        %328 = vmatprep.mubr.f32.mxu0 0.0
        %329 = vmatmul.mubr.f32.gmra.mrb[0].mxu0 %v211
        %v330 = vpop.f32.mrb[0].mxu0
        %v331 = vadd.f32 0.0, %v330
        %v332 = vpop.f32.mrb[0].mxu0
        %333 = vmatprep.mubr.f32.mxu0 0.0
        %334 = vmatmul.mubr.f32.gmra.mrb[0].mxu0 %v214
        %v335 = vpop.f32.mrb[0].mxu0
        %v336 = vadd.f32 0.0, %v335
        %v337 = vpop.f32.mrb[0].mxu0
        %338 = vdwg.mxu0
        %s339 = smul.u32 %s23, 128
        %v340 = vlaneseq
        %v341 = vand.u32 %v340, 127
        %v342 = vstv %s339
        %v343 = vadd.s32 %v342, %v341
        %vm344 = vcmp.lt.s32.totalorder %v343, 64
        %v345 = vsel %vm344, %v331, -1e+30
        %v346 = vsel %vm344, %v336, -1e+30
        %p347 = scmp.eq.s32.totalorder %s22, 0
        %p348 = scmp.eq.s32.totalorder %s23, 0
        %p349 = pnand %p347, %p348
        %p350 = pneg %p349
        // Predicated region
        $region29: #{tpu_custom_call.1} parent=27 // pred_check
          _
        $region30: #{tpu_custom_call.1} parent=27 // pred_check_branch
          %352 = sbr.rel (%p349) target = $region32
        $region31: #{tpu_custom_call.1} parent=27 // pred_region
          %vm353 = vcmask 7168
          %354 = vst.msk [vmem:[#allocation2] sm:$0xff] %vm353, -1e+30
          %355 = vst.msk [vmem:[#allocation2 + $0x8] sm:$0xff] %vm353, -1e+30
          %356 = vst.msk [vmem:[#allocation3] sm:$0xff] %vm353, 0.0
          %357 = vst.msk [vmem:[#allocation3 + $0x8] sm:$0xff] %vm353, 0.0
        $region32: #{tpu_custom_call.1} parent=27 // pred_fallthru
          _
        // Predicated region
        $region33: #{tpu_custom_call.1} parent=27 // pred_check
          %p358 = pneg %p347
        $region34: #{tpu_custom_call.1} parent=27 // pred_check_branch
          %360 = sbr.rel (%p358) target = $region36
        $region35: #{tpu_custom_call.1} parent=27 // pred_region
          %v361 = vld [vmem:[#allocation2] sm:$0xff]
          %v362 = vld [vmem:[#allocation2 + $0x8] sm:$0xff]
          %363 = vmax.xlane.f32.xlu0 %v345
          %v364 = vpop.xlane.xlu0 %363
          %365 = vmax.xlane.f32.xlu0 %v346
          %v366 = vpop.xlane.xlu0 %365
          %v367 = vmax.f32 %v361, %v364
          %v368 = vmax.f32 %v362, %v366
          %v369 = vld [vmem:[#allocation3] sm:$0xff]
          %v370 = vld [vmem:[#allocation3 + $0x8] sm:$0xff]
          %v371 = vsub.f32 %v361, %v367
          %v372 = vsub.f32 %v362, %v368
          %v373 = vmul.f32 %v371, 1.442695
          %v374 = vpow.pop %v373
          %v375 = vmul.f32 %v372, 1.442695
          %v376 = vpow.pop %v375
          %v377 = vmul.f32 %v369, %v374
          %v378 = vmul.f32 %v370, %v376
          %380 = vset.pattern.permute.xlu0 0
          %381 = vperm.xlu0 %380, %v367
          %v382 = vpop.permute.xlu0 %381
          %385 = vset.pattern.permute.xlu0 0
          %386 = vperm.xlu0 %385, %v368
          %v387 = vpop.permute.xlu0 %386
          %v389 = vsub.f32 %v345, %v382
          %v390 = vsub.f32 %v346, %v387
          %v391 = vmul.f32 %v389, 1.442695
          %v392 = vpow.pop %v391
          %v393 = vmul.f32 %v390, 1.442695
          %v394 = vpow.pop %v393
          %395 = vadd.xlane.f32.xlu0 %v392
          %v396 = vpop.xlane.xlu0 %395
          %397 = vadd.xlane.f32.xlu0 %v394
          %v398 = vpop.xlane.xlu0 %397
          %v399 = vadd.f32 %v377, %v396
          %v400 = vadd.f32 %v378, %v398
          %vm401 = vcmask 7168
          %402 = vst.msk [vmem:[#allocation3] sm:$0xff] %vm401, %v399
          %403 = vst.msk [vmem:[#allocation3 + $0x8] sm:$0xff] %vm401, %v400
          %404 = vst.msk [vmem:[#allocation2] sm:$0xff] %vm401, %v367
          %405 = vst.msk [vmem:[#allocation2 + $0x8] sm:$0xff] %vm401, %v368
        $region36: #{tpu_custom_call.1} parent=27 // pred_fallthru
          _
        %p406 = scmp.eq.s32.totalorder %s22, 1
        // Predicated region
        $region37: #{tpu_custom_call.1} parent=27 // pred_check
          %p407 = pneg %p406
        $region38: #{tpu_custom_call.1} parent=27 // pred_check_branch
          %409 = sbr.rel (%p407) target = $region40
        $region39: #{tpu_custom_call.1} parent=27 // pred_region
          %v410 = vld [vmem:[#allocation2] sm:$0xff]
          %v411 = vld [vmem:[#allocation2 + $0x8] sm:$0xff]
          %v412 = vld [vmem:[#allocation3] sm:$0xff]
          %v413 = vld [vmem:[#allocation3 + $0x8] sm:$0xff]
          %v414 = vlog2.pop %v412
          %v415 = vmul.f32 %v414, 0.6931472
          %v416 = vlog2.pop %v413
          %v417 = vmul.f32 %v416, 0.6931472
          %v418 = vadd.f32 %v410, %v415
          %v419 = vadd.f32 %v411, %v417
          %421 = vset.pattern.permute.xlu0 0
          %422 = vperm.xlu0 %421, %v418
          %v423 = vpop.permute.xlu0 %422
          %426 = vset.pattern.permute.xlu0 0
          %427 = vperm.xlu0 %426, %v419
          %v428 = vpop.permute.xlu0 %427
          %v430 = vsub.f32 %v345, %v423
          %v431 = vsub.f32 %v346, %v428
          %432 = vst [vmem:[%s176] sm:$0xff] %v430
          %433 = vst [vmem:[%s176 + $0x8] sm:$0xff] %v431
        $region40: #{tpu_custom_call.1} parent=27 // pred_fallthru
          _
        %s434 = sand.u32 %s99, 1
        %s435 = scalar_lea.sflag [#allocation5], %s434
        %s436 = sand.u32 %s99, 1
        %s437 = smul.addr %s436, 16
        %s438 = scalar_lea.vmem [#allocation4], %s437
        // Predicated region
        $region41: #{tpu_custom_call.1} parent=27 // pred_check
          %p439 = pneg %p109
        $region42: #{tpu_custom_call.1} parent=27 // pred_check_branch
          %441 = sbr.rel (%p439) target = $region44
        $region43: #{tpu_custom_call.1} parent=27 // pred_region
          %s442 = smul.u32 %s23, %s22
          %s443 = smul.u32 2, %s21
          %s445 = ssub.s32 256, 256
          %446 = vsyncadd %s435, %s445
          %s447 = sadd.s32 %s442, %s443
          %s448 = smul.addr %s447, 128
          %s449 = scalar_lea.hbm %s2, %s448
          %s450 = sshll.u32 %s438, 4
          %s451 = int_to_ptr.vmem [resolvable:$true] %s450
          %456 = dma.vmem_to_hbm [thread:$0]  %s451, 256, %s449, %s435, 128, 128, 8
        $region44: #{tpu_custom_call.1} parent=27 // pred_fallthru
          _
      $region28: #{tpu_custom_call.1} parent=5 // pred_fallthru
        _
      %p457 = scmp.le.s32.totalorder 2, %s11
      // Predicated region
      $region45: #{tpu_custom_call.1} parent=5 // pred_check
        %p458 = pneg %p457
      $region46: #{tpu_custom_call.1} parent=5 // pred_check_branch
        %460 = sbr.rel (%p458) target = $region48
      $region47: #{tpu_custom_call.1} parent=5 // pred_region
        %s461 = ssub.s32 %s11, 2
        // Predicated region
        $region49: #{tpu_custom_call.1} parent=47 // pred_check
          %p462 = pneg %p115
        $region50: #{tpu_custom_call.1} parent=47 // pred_check_branch
          %464 = sbr.rel (%p462) target = $region52
        $region51: #{tpu_custom_call.1} parent=47 // pred_region
          %s465 = sand.u32 %s100, 1
          %s466 = scalar_lea.sflag [#allocation5], %s465
          %s467 = sand.u32 %s100, 1
          %s468 = smul.addr %s467, 16
          %s469 = scalar_lea.vmem [#allocation4], %s468
          %470 = dma.done %s466, 256
        $region52: #{tpu_custom_call.1} parent=47 // pred_fallthru
          _
      $region48: #{tpu_custom_call.1} parent=5 // pred_fallthru
        _
    $region6: #{tpu_custom_call.1} parent=1 // loop_footer
      %s15 = sadd.s32 1, %s11
    $region7: #{tpu_custom_call.1} parent=1 // loop_footer_branch
      %10 = sbr.rel target = $region3
    $region8: #{tpu_custom_call.1} parent=1 // loop_exit
      _
    %471 = vsyncpa [#allocation5], 1
    %s472 = scalar_lea.sflag [#allocation5], 1
    %473 = vsyncpa %s472, 1

</llo_original>
